<compile_context>
chip_gen: v6e
topology: v6e:2x2x1
jax: 0.10.0
libtpu: 0.0.40
codegen_flags: <defaults>
</compile_context>

<pallas_src>
import functools
import math

import jax
import jax.numpy as jnp
from jax import lax
from jax.experimental import pallas as pl
from jax.experimental.pallas import tpu as pltpu


def _attn_kernel(x_ref, w_ref, mask_ref, o_ref, *, num_heads: int, head_dim: int):
    # x_ref:    (1, S, E)  bf16  — current batch row
    # w_ref:    (E, 3E)    bf16  — fused QKV projection, columns ordered (k, h, e)
    # mask_ref: (S, S)     f32   — additive mask, shared across batch & heads
    # o_ref:    (1, S, E)  f32   — output already in 'b s (h e)' layout
    x = x_ref[0]                       # (S, E)
    w = w_ref[...]                     # (E, 3E)
    E = num_heads * head_dim
    scale = 1.0 / math.sqrt(head_dim)

    # Single lane-dense MXU call for the full QKV projection of this batch row.
    qkv = jnp.dot(x, w, preferred_element_type=jnp.float32)       # (S, 3E) f32
    mask = mask_ref[...]                                          # (S, S)  f32

    head_outs = []
    for h in range(num_heads):         # static H -> fully unrolled
        q = (qkv[:, h * head_dim:(h + 1) * head_dim] * scale).astype(jnp.bfloat16)
        k = qkv[:, E + h * head_dim:E + (h + 1) * head_dim].astype(jnp.bfloat16)
        v = qkv[:, 2 * E + h * head_dim:2 * E + (h + 1) * head_dim].astype(jnp.bfloat16)

        # q @ k^T by contracting last dims directly (no materialized transpose).
        score = lax.dot_general(q, k, (((1,), (1,)), ((), ())),
                                preferred_element_type=jnp.float32)  # (S, S)
        score = score + mask

        m = jnp.max(score, axis=-1, keepdims=True)
        p = jnp.exp(score - m)
        p = p * pl.reciprocal(jnp.sum(p, axis=-1, keepdims=True), approx=True)

        head_outs.append(
            jnp.dot(p.astype(jnp.bfloat16), v,
                    preferred_element_type=jnp.float32))             # (S, e)

    # One lane-dense store in the final (b, s, h*e) layout.
    o_ref[0] = jnp.concatenate(head_outs, axis=-1).astype(o_ref.dtype)


def attention_pallas(x, w1, mask, number_of_heads):
    """x: (B, S, E) f32; w1: (3E, E) (PyTorch out x in layout); mask: (S, S)."""
    B, S, E = x.shape
    H = number_of_heads
    e = E // H
    assert H * e == E and w1.shape == (3 * E, E)

    # linear_1(x) = x @ w1.T ; the columns of w1.T are already ordered (k, h, e),
    # so per-head q/k/v slices come straight out of the fused (S, 3E) result.
    w_qkv = w1.T.astype(jnp.bfloat16)         # (E, 3E)
    x_bf = x.astype(jnp.bfloat16)
    mask_f32 = mask.astype(jnp.float32)

    kernel = functools.partial(_attn_kernel, num_heads=H, head_dim=e)

    return pl.pallas_call(
        kernel,
        out_shape=jax.ShapeDtypeStruct((B, S, E), x.dtype),
        grid_spec=pltpu.PrefetchScalarGridSpec(
            num_scalar_prefetch=0,
            grid=(B,),
            in_specs=[
                pl.BlockSpec((1, S, E), lambda b: (b, 0, 0)),   # x (per batch row)
                pl.BlockSpec((E, 3 * E), lambda b: (0, 0)),     # fused W_qkv
                pl.BlockSpec((S, S), lambda b: (0, 0)),         # additive mask
            ],
            out_specs=pl.BlockSpec((1, S, E), lambda b: (b, 0, 0)),
        ),
        compiler_params=pltpu.CompilerParams(
            dimension_semantics=("parallel",)),
    )(x_bf, w_qkv, mask_f32)


def attention_ref(x, w1, mask, number_of_heads):
    """Pure-JAX f32 reference mirroring the PyTorch forward."""
    B, S, E = x.shape
    H = number_of_heads
    e = E // H
    qkv = x @ w1.T                                   # (B, S, 3E)
    qkv = qkv.reshape(B, S, 3, H, e)                 # b s (k h e) -> b s k h e
    qkv = jnp.transpose(qkv, (2, 0, 3, 1, 4))        # k b h s e
    q, k, v = qkv[0], qkv[1], qkv[2]
    score = jnp.einsum('bhxe,bhye->bhxy', q, k)
    score = jax.nn.softmax(score / math.sqrt(e) + mask, axis=-1)
    out = jnp.einsum('bhxy,bhye->bhxe', score, v)
    return jnp.transpose(out, (0, 2, 1, 3)).reshape(B, S, E)


if __name__ == "__main__":
    B, S, E, H = 2, 8, 32, 4

    key = jax.random.PRNGKey(0)
    kx, kw = jax.random.split(key)
    x = jax.random.normal(kx, (B, S, E), dtype=jnp.float32)
    # Deterministic init for linear_1 weight (3E, E); linear_2 is unused in forward.
    w1 = (jax.random.uniform(kw, (3 * E, E), dtype=jnp.float32) - 0.5) * (2.0 / math.sqrt(E))
    # Additive causal mask, shared across batch and heads.
    causal = jnp.tril(jnp.ones((S, S), dtype=jnp.float32))
    mask = jnp.where(causal > 0, 0.0, -1e9).astype(jnp.float32)

    out = attention_pallas(x, w1, mask, H)
    out = jax.block_until_ready(out)

    ref = attention_ref(x, w1, mask, H)
    assert out.shape == (B, S, E)
    # bf16 MXU operands + approx reciprocal -> looser tolerance than pure f32.
    assert jnp.allclose(out, ref, atol=5e-2, rtol=5e-2), "mismatch vs reference"

    print("KERNEL_OK")
</pallas_src>

<mosaic_0001>
module attributes {stable_mosaic.version = 11 : i64} {
  func.func @_attn_kernel(%arg0: i32, %arg1: memref<1x8x32xbf16, #tpu.memory_space<vmem>>, %arg2: memref<32x96xbf16, #tpu.memory_space<vmem>>, %arg3: memref<8x8xf32, #tpu.memory_space<vmem>>, %arg4: memref<1x8x32xf32, #tpu.memory_space<vmem>>) attributes {dimension_semantics = [#tpu.dimension_semantics<parallel>], iteration_bounds = array<i64: 2>, scalar_prefetch = 0 : i64, scratch_operands = 0 : i64, tpu.core_type = #tpu.core_type<tc>, window_params = [{transform_indices = @transform_0, window_bounds = array<i64: 1, 8, 32>}, {pipeline_mode = #tpu.pipeline_mode<synchronous>, transform_indices = @transform_1, window_bounds = array<i64: 32, 96>}, {pipeline_mode = #tpu.pipeline_mode<synchronous>, transform_indices = @transform_2, window_bounds = array<i64: 8, 8>}, {transform_indices = @transform_3, window_bounds = array<i64: 1, 8, 32>}]} {
    %c0 = arith.constant 0 : index
    %c0_0 = arith.constant 0 : index
    %c0_1 = arith.constant 0 : index
    %0 = vector.load %arg1[%c0, %c0_0, %c0_1] : memref<1x8x32xbf16, #tpu.memory_space<vmem>>, vector<1x8x32xbf16>
    %1 = vector.shape_cast %0 : vector<1x8x32xbf16> to vector<8x32xbf16>
    %c0_2 = arith.constant 0 : index
    %c0_3 = arith.constant 0 : index
    %2 = vector.load %arg2[%c0_2, %c0_3] : memref<32x96xbf16, #tpu.memory_space<vmem>>, vector<32x96xbf16>
    %cst = arith.constant dense<0.000000e+00> : vector<8x96xf32>
    %3 = tpu.matmul %1, %2, %cst {dimension_numbers = #tpu.dot_dimension_numbers<[1], [0], [0], [1], [0, 0, 1, 1], [], []>} : vector<8x32xbf16>, vector<32x96xbf16>, vector<8x96xf32> -> vector<8x96xf32>
    %c0_4 = arith.constant 0 : index
    %c0_5 = arith.constant 0 : index
    %4 = vector.load %arg3[%c0_4, %c0_5] : memref<8x8xf32, #tpu.memory_space<vmem>>, vector<8x8xf32>
    %5 = vector.extract_strided_slice %3 {offsets = [0, 0], sizes = [8, 8], strides = [1, 1]} : vector<8x96xf32> to vector<8x8xf32>
    %cst_6 = arith.constant 0.353553385 : f32
    %6 = vector.broadcast %cst_6 : f32 to vector<8x8xf32>
    %7 = arith.mulf %5, %6 : vector<8x8xf32>
    %8 = arith.truncf %7 : vector<8x8xf32> to vector<8x8xbf16>
    %9 = vector.extract_strided_slice %3 {offsets = [0, 32], sizes = [8, 8], strides = [1, 1]} : vector<8x96xf32> to vector<8x8xf32>
    %10 = arith.truncf %9 : vector<8x8xf32> to vector<8x8xbf16>
    %11 = vector.extract_strided_slice %3 {offsets = [0, 64], sizes = [8, 8], strides = [1, 1]} : vector<8x96xf32> to vector<8x8xf32>
    %12 = arith.truncf %11 : vector<8x8xf32> to vector<8x8xbf16>
    %cst_7 = arith.constant dense<0.000000e+00> : vector<8x8xf32>
    %13 = tpu.matmul %8, %10, %cst_7 {dimension_numbers = #tpu.dot_dimension_numbers<[1], [1], [0], [0], [0, 0, 1, 0], [], []>} : vector<8x8xbf16>, vector<8x8xbf16>, vector<8x8xf32> -> vector<8x8xf32>
    %14 = arith.addf %13, %4 : vector<8x8xf32>
    %cst_8 = arith.constant dense<0xFF800000> : vector<8xf32>
    %15 = vector.multi_reduction <maximumf>, %14, %cst_8 [1] : vector<8x8xf32> to vector<8xf32>
    %16 = vector.shape_cast %15 : vector<8xf32> to vector<8x1xf32>
    %17 = vector.broadcast %16 : vector<8x1xf32> to vector<8x8xf32>
    %18 = arith.subf %14, %17 : vector<8x8xf32>
    %19 = math.exp %18 : vector<8x8xf32>
    %cst_9 = arith.constant dense<0.000000e+00> : vector<8xf32>
    %20 = vector.multi_reduction <add>, %19, %cst_9 [1] : vector<8x8xf32> to vector<8xf32>
    %21 = vector.shape_cast %20 : vector<8xf32> to vector<8x1xf32>
    %22 = tpu.reciprocal %21 {approx = true} : vector<8x1xf32> -> vector<8x1xf32>
    %23 = vector.broadcast %22 : vector<8x1xf32> to vector<8x8xf32>
    %24 = arith.mulf %19, %23 : vector<8x8xf32>
    %25 = arith.truncf %24 : vector<8x8xf32> to vector<8x8xbf16>
    %cst_10 = arith.constant dense<0.000000e+00> : vector<8x8xf32>
    %26 = tpu.matmul %25, %12, %cst_10 {dimension_numbers = #tpu.dot_dimension_numbers<[1], [0], [0], [1], [0, 0, 1, 1], [], []>} : vector<8x8xbf16>, vector<8x8xbf16>, vector<8x8xf32> -> vector<8x8xf32>
    %27 = vector.extract_strided_slice %3 {offsets = [0, 8], sizes = [8, 8], strides = [1, 1]} : vector<8x96xf32> to vector<8x8xf32>
    %cst_11 = arith.constant 0.353553385 : f32
    %28 = vector.broadcast %cst_11 : f32 to vector<8x8xf32>
    %29 = arith.mulf %27, %28 : vector<8x8xf32>
    %30 = arith.truncf %29 : vector<8x8xf32> to vector<8x8xbf16>
    %31 = vector.extract_strided_slice %3 {offsets = [0, 40], sizes = [8, 8], strides = [1, 1]} : vector<8x96xf32> to vector<8x8xf32>
    %32 = arith.truncf %31 : vector<8x8xf32> to vector<8x8xbf16>
    %33 = vector.extract_strided_slice %3 {offsets = [0, 72], sizes = [8, 8], strides = [1, 1]} : vector<8x96xf32> to vector<8x8xf32>
    %34 = arith.truncf %33 : vector<8x8xf32> to vector<8x8xbf16>
    %cst_12 = arith.constant dense<0.000000e+00> : vector<8x8xf32>
    %35 = tpu.matmul %30, %32, %cst_12 {dimension_numbers = #tpu.dot_dimension_numbers<[1], [1], [0], [0], [0, 0, 1, 0], [], []>} : vector<8x8xbf16>, vector<8x8xbf16>, vector<8x8xf32> -> vector<8x8xf32>
    %36 = arith.addf %35, %4 : vector<8x8xf32>
    %cst_13 = arith.constant dense<0xFF800000> : vector<8xf32>
    %37 = vector.multi_reduction <maximumf>, %36, %cst_13 [1] : vector<8x8xf32> to vector<8xf32>
    %38 = vector.shape_cast %37 : vector<8xf32> to vector<8x1xf32>
    %39 = vector.broadcast %38 : vector<8x1xf32> to vector<8x8xf32>
    %40 = arith.subf %36, %39 : vector<8x8xf32>
    %41 = math.exp %40 : vector<8x8xf32>
    %cst_14 = arith.constant dense<0.000000e+00> : vector<8xf32>
    %42 = vector.multi_reduction <add>, %41, %cst_14 [1] : vector<8x8xf32> to vector<8xf32>
    %43 = vector.shape_cast %42 : vector<8xf32> to vector<8x1xf32>
    %44 = tpu.reciprocal %43 {approx = true} : vector<8x1xf32> -> vector<8x1xf32>
    %45 = vector.broadcast %44 : vector<8x1xf32> to vector<8x8xf32>
    %46 = arith.mulf %41, %45 : vector<8x8xf32>
    %47 = arith.truncf %46 : vector<8x8xf32> to vector<8x8xbf16>
    %cst_15 = arith.constant dense<0.000000e+00> : vector<8x8xf32>
    %48 = tpu.matmul %47, %34, %cst_15 {dimension_numbers = #tpu.dot_dimension_numbers<[1], [0], [0], [1], [0, 0, 1, 1], [], []>} : vector<8x8xbf16>, vector<8x8xbf16>, vector<8x8xf32> -> vector<8x8xf32>
    %49 = vector.extract_strided_slice %3 {offsets = [0, 16], sizes = [8, 8], strides = [1, 1]} : vector<8x96xf32> to vector<8x8xf32>
    %cst_16 = arith.constant 0.353553385 : f32
    %50 = vector.broadcast %cst_16 : f32 to vector<8x8xf32>
    %51 = arith.mulf %49, %50 : vector<8x8xf32>
    %52 = arith.truncf %51 : vector<8x8xf32> to vector<8x8xbf16>
    %53 = vector.extract_strided_slice %3 {offsets = [0, 48], sizes = [8, 8], strides = [1, 1]} : vector<8x96xf32> to vector<8x8xf32>
    %54 = arith.truncf %53 : vector<8x8xf32> to vector<8x8xbf16>
    %55 = vector.extract_strided_slice %3 {offsets = [0, 80], sizes = [8, 8], strides = [1, 1]} : vector<8x96xf32> to vector<8x8xf32>
    %56 = arith.truncf %55 : vector<8x8xf32> to vector<8x8xbf16>
    %cst_17 = arith.constant dense<0.000000e+00> : vector<8x8xf32>
    %57 = tpu.matmul %52, %54, %cst_17 {dimension_numbers = #tpu.dot_dimension_numbers<[1], [1], [0], [0], [0, 0, 1, 0], [], []>} : vector<8x8xbf16>, vector<8x8xbf16>, vector<8x8xf32> -> vector<8x8xf32>
    %58 = arith.addf %57, %4 : vector<8x8xf32>
    %cst_18 = arith.constant dense<0xFF800000> : vector<8xf32>
    %59 = vector.multi_reduction <maximumf>, %58, %cst_18 [1] : vector<8x8xf32> to vector<8xf32>
    %60 = vector.shape_cast %59 : vector<8xf32> to vector<8x1xf32>
    %61 = vector.broadcast %60 : vector<8x1xf32> to vector<8x8xf32>
    %62 = arith.subf %58, %61 : vector<8x8xf32>
    %63 = math.exp %62 : vector<8x8xf32>
    %cst_19 = arith.constant dense<0.000000e+00> : vector<8xf32>
    %64 = vector.multi_reduction <add>, %63, %cst_19 [1] : vector<8x8xf32> to vector<8xf32>
    %65 = vector.shape_cast %64 : vector<8xf32> to vector<8x1xf32>
    %66 = tpu.reciprocal %65 {approx = true} : vector<8x1xf32> -> vector<8x1xf32>
    %67 = vector.broadcast %66 : vector<8x1xf32> to vector<8x8xf32>
    %68 = arith.mulf %63, %67 : vector<8x8xf32>
    %69 = arith.truncf %68 : vector<8x8xf32> to vector<8x8xbf16>
    %cst_20 = arith.constant dense<0.000000e+00> : vector<8x8xf32>
    %70 = tpu.matmul %69, %56, %cst_20 {dimension_numbers = #tpu.dot_dimension_numbers<[1], [0], [0], [1], [0, 0, 1, 1], [], []>} : vector<8x8xbf16>, vector<8x8xbf16>, vector<8x8xf32> -> vector<8x8xf32>
    %71 = vector.extract_strided_slice %3 {offsets = [0, 24], sizes = [8, 8], strides = [1, 1]} : vector<8x96xf32> to vector<8x8xf32>
    %cst_21 = arith.constant 0.353553385 : f32
    %72 = vector.broadcast %cst_21 : f32 to vector<8x8xf32>
    %73 = arith.mulf %71, %72 : vector<8x8xf32>
    %74 = arith.truncf %73 : vector<8x8xf32> to vector<8x8xbf16>
    %75 = vector.extract_strided_slice %3 {offsets = [0, 56], sizes = [8, 8], strides = [1, 1]} : vector<8x96xf32> to vector<8x8xf32>
    %76 = arith.truncf %75 : vector<8x8xf32> to vector<8x8xbf16>
    %77 = vector.extract_strided_slice %3 {offsets = [0, 88], sizes = [8, 8], strides = [1, 1]} : vector<8x96xf32> to vector<8x8xf32>
    %78 = arith.truncf %77 : vector<8x8xf32> to vector<8x8xbf16>
    %cst_22 = arith.constant dense<0.000000e+00> : vector<8x8xf32>
    %79 = tpu.matmul %74, %76, %cst_22 {dimension_numbers = #tpu.dot_dimension_numbers<[1], [1], [0], [0], [0, 0, 1, 0], [], []>} : vector<8x8xbf16>, vector<8x8xbf16>, vector<8x8xf32> -> vector<8x8xf32>
    %80 = arith.addf %79, %4 : vector<8x8xf32>
    %cst_23 = arith.constant dense<0xFF800000> : vector<8xf32>
    %81 = vector.multi_reduction <maximumf>, %80, %cst_23 [1] : vector<8x8xf32> to vector<8xf32>
    %82 = vector.shape_cast %81 : vector<8xf32> to vector<8x1xf32>
    %83 = vector.broadcast %82 : vector<8x1xf32> to vector<8x8xf32>
    %84 = arith.subf %80, %83 : vector<8x8xf32>
    %85 = math.exp %84 : vector<8x8xf32>
    %cst_24 = arith.constant dense<0.000000e+00> : vector<8xf32>
    %86 = vector.multi_reduction <add>, %85, %cst_24 [1] : vector<8x8xf32> to vector<8xf32>
    %87 = vector.shape_cast %86 : vector<8xf32> to vector<8x1xf32>
    %88 = tpu.reciprocal %87 {approx = true} : vector<8x1xf32> -> vector<8x1xf32>
    %89 = vector.broadcast %88 : vector<8x1xf32> to vector<8x8xf32>
    %90 = arith.mulf %85, %89 : vector<8x8xf32>
    %91 = arith.truncf %90 : vector<8x8xf32> to vector<8x8xbf16>
    %cst_25 = arith.constant dense<0.000000e+00> : vector<8x8xf32>
    %92 = tpu.matmul %91, %78, %cst_25 {dimension_numbers = #tpu.dot_dimension_numbers<[1], [0], [0], [1], [0, 0, 1, 1], [], []>} : vector<8x8xbf16>, vector<8x8xbf16>, vector<8x8xf32> -> vector<8x8xf32>
    %93 = tpu.concatenate %26, %48, %70, %92 in 1 : vector<8x8xf32>, vector<8x8xf32>, vector<8x8xf32>, vector<8x8xf32> -> vector<8x32xf32>
    %c0_26 = arith.constant 0 : index
    %c0_27 = arith.constant 0 : index
    %c0_28 = arith.constant 0 : index
    %94 = vector.load %arg4[%c0_26, %c0_27, %c0_28] : memref<1x8x32xf32, #tpu.memory_space<vmem>>, vector<1x8x32xf32>
    %95 = vector.shape_cast %94 : vector<1x8x32xf32> to vector<8x32xf32>
    %96 = vector.shape_cast %93 : vector<8x32xf32> to vector<1x8x32xf32>
    tpu.vector_store %arg4[%c0_26, %c0_27, %c0_28], %96 {strides = array<i32>} : memref<1x8x32xf32, #tpu.memory_space<vmem>>, vector<1x8x32xf32>,
    return
  }
  func.func @transform_0(%arg0: i32) -> (i32, i32, i32) {
    %c0_i32 = arith.constant 0 : i32
    %c0_i32_0 = arith.constant 0 : i32
    %c0_i32_1 = arith.constant 0 : i32
    return %arg0, %c0_i32, %c0_i32_0 : i32, i32, i32
  }
  func.func @transform_1(%arg0: i32) -> (i32, i32) {
    %c0_i32 = arith.constant 0 : i32
    %c0_i32_0 = arith.constant 0 : i32
    %c0_i32_1 = arith.constant 0 : i32
    return %c0_i32, %c0_i32_0 : i32, i32
  }
  func.func @transform_2(%arg0: i32) -> (i32, i32) {
    %c0_i32 = arith.constant 0 : i32
    %c0_i32_0 = arith.constant 0 : i32
    %c0_i32_1 = arith.constant 0 : i32
    return %c0_i32, %c0_i32_0 : i32, i32
  }
  func.func @transform_3(%arg0: i32) -> (i32, i32, i32) {
    %c0_i32 = arith.constant 0 : i32
    %c0_i32_0 = arith.constant 0 : i32
    %c0_i32_1 = arith.constant 0 : i32
    return %arg0, %c0_i32, %c0_i32_0 : i32, i32, i32
  }
}

</mosaic_0001>

<llo_original>
// kernel: tpu_custom_call.1
$region0: #{tpu_custom_call.1}
  #allocation0 [shape = 'u32[]', space=smem, size = 0x4, offset = 0x4, fixed_abs, tag = 'smem constant byte address 0x4 - core index']
  #allocation1 [shape = 'u32[144,128]{1,0:T(1,128)}', space=vmem, size = 0x12000, scoped, tag = 'internal scratch']
  %s0 = inlined_call_operand.hbm [shape: bf16[2,8,32], index: 0, kind: input, shape index: {}]
  %s1 = inlined_call_operand.hbm [shape: bf16[32,96], index: 1, kind: input, shape index: {}]
  %s2 = inlined_call_operand.hbm [shape: f32[8,8], index: 2, kind: input, shape index: {}]
  %s3 = inlined_call_operand.hbm [shape: f32[2,8,32], index: 3, kind: output, shape index: {}]
  %s4 = sld [smem:[#allocation0]]
  $region57: #{tpu_custom_call.1} parent=0
    _
  %s6 = ssub.s32 1, %s4
  %s7 = scalar_select 0, %s6, %s4
  $region1: #{tpu_custom_call.1} parent=0
    #allocation2 [shape = 'u8[4096]{0}', space=vmem, size = 0x1000, scoped, tag = 'input window, operand 0']
    #allocation3 [shape = 's32[2]{0}', space=sflag, size = 0x8, scoped, tag = 'scoped memory for tpu_custom_call.1']
    #allocation4 [shape = 's32[2]{0}', space=sflag, size = 0x8, scoped, tag = 'scoped memory for tpu_custom_call.1']
    #allocation5 [shape = 'u8[8192]{0}', space=vmem, size = 0x2000, scoped, tag = 'input window, operand 1, single buffered']
    #allocation6 [shape = 's32[1]{0}', space=sflag, size = 0x4, scoped, tag = 'scoped memory for tpu_custom_call.1']
    #allocation7 [shape = 'u8[4096]{0}', space=vmem, size = 0x1000, scoped, tag = 'input window, operand 2, single buffered']
    #allocation8 [shape = 'u8[8192]{0}', space=vmem, size = 0x2000, scoped, tag = 'output window, operand 0']
    %8 = vsyncpa [#allocation3], 0
    %s9 = scalar_lea.sflag [#allocation3], 1
    %10 = vsyncpa %s9, 0
    %11 = vsyncpa [#allocation6], 0
    %12 = vsyncpa [#allocation4], 0
    %s13 = scalar_lea.sflag [#allocation4], 1
    %14 = vsyncpa %s13, 0
    loop: start=0, step=1, limit=4
    $region2: #{tpu_custom_call.1} parent=1 // loop_pre_header
      _
    $region3: #{tpu_custom_call.1} parent=1 // loop_header
      %s16 = sphi 0, %s20
      %p17 = scmp.ge.s32.totalorder %s16, 4
      %s26 = sphi 0, %s28
      %s29 = sphi 0, %s26
      %s30 = sphi 0, %s29
      %s46 = sphi 0, %s30
      %s50 = sphi 0, %s50
      %s52 = sphi 0, %s50
      %s53 = sphi 0, %s52
      %s67 = sphi 0, %s53
      %s71 = sphi 0, %s71
      %s73 = sphi 0, %s71
      %s74 = sphi 0, %s73
      %s88 = sphi 0, %s74
      %s94 = sphi 0, %s96
      %s97 = sphi 0, %s94
      %s98 = sphi 0, %s97
      %s114 = sphi 0, %s98
    $region4: #{tpu_custom_call.1} parent=1 // loop_header_branch
      %19 = sbr.rel (%p17) target = $region8
    $region5: #{tpu_custom_call.1} parent=1 // loop_body
      %s21 = ssub.s32 %s16, 1
      %s22 = ssub.s32 %s16, 2
      %s23 = sadd.s32 %s16, 1
      %s24 = ssub.s32 %s16, %s23
      %p25 = scmp.eq.s32.totalorder %s24, 0
      %s27 = sadd.s32 %s26, 1
      %s28 = scalar_select %p25, %s26, %s27
      %p31 = pneg %p25
      %p32 = scmp.eq.s32.totalorder %s16, 1
      %p33 = por %p31, %p32
      %p34 = scmp.ne.s32.totalorder %s26, %s29
      %p35 = scmp.eq.s32.totalorder %s16, 0
      %p36 = por %p34, %p35
      %p37 = scmp.ne.s32.totalorder %s26, %s29
      %p38 = scmp.eq.s32.totalorder %s21, 1
      %p39 = por %p37, %p38
      %p40 = scmp.ne.s32.totalorder %s29, %s30
      %p41 = scmp.eq.s32.totalorder %s21, 0
      %p42 = por %p40, %p41
      %p43 = scmp.ne.s32.totalorder %s29, %s30
      %p44 = scmp.eq.s32.totalorder %s22, 1
      %p45 = por %p43, %p44
      %p47 = scmp.ne.s32.totalorder %s30, %s46
      %p48 = scmp.eq.s32.totalorder %s22, 0
      %p49 = por %p47, %p48
      %s51 = sadd.s32 %s50, 1
      %p54 = scmp.eq.s32.totalorder %s16, 1
      %p55 = scmp.ne.s32.totalorder %s50, %s52
      %p56 = scmp.eq.s32.totalorder %s16, 0
      %p57 = por %p55, %p56
      %p58 = scmp.ne.s32.totalorder %s50, %s52
      %p59 = scmp.eq.s32.totalorder %s21, 1
      %p60 = por %p58, %p59
      %p61 = scmp.ne.s32.totalorder %s52, %s53
      %p62 = scmp.eq.s32.totalorder %s21, 0
      %p63 = por %p61, %p62
      %p64 = scmp.ne.s32.totalorder %s52, %s53
      %p65 = scmp.eq.s32.totalorder %s22, 1
      %p66 = por %p64, %p65
      %p68 = scmp.ne.s32.totalorder %s53, %s67
      %p69 = scmp.eq.s32.totalorder %s22, 0
      %p70 = por %p68, %p69
      %s72 = sadd.s32 %s71, 1
      %p75 = scmp.eq.s32.totalorder %s16, 1
      %p76 = scmp.ne.s32.totalorder %s71, %s73
      %p77 = scmp.eq.s32.totalorder %s16, 0
      %p78 = por %p76, %p77
      %p79 = scmp.ne.s32.totalorder %s71, %s73
      %p80 = scmp.eq.s32.totalorder %s21, 1
      %p81 = por %p79, %p80
      %p82 = scmp.ne.s32.totalorder %s73, %s74
      %p83 = scmp.eq.s32.totalorder %s21, 0
      %p84 = por %p82, %p83
      %p85 = scmp.ne.s32.totalorder %s73, %s74
      %p86 = scmp.eq.s32.totalorder %s22, 1
      %p87 = por %p85, %p86
      %p89 = scmp.ne.s32.totalorder %s74, %s88
      %p90 = scmp.eq.s32.totalorder %s22, 0
      %p91 = por %p89, %p90
      %s92 = ssub.s32 %s16, %s23
      %p93 = scmp.eq.s32.totalorder %s92, 0
      %s95 = sadd.s32 %s94, 1
      %s96 = scalar_select %p93, %s94, %s95
      %p99 = pneg %p93
      %p100 = scmp.eq.s32.totalorder %s16, 1
      %p101 = por %p99, %p100
      %p102 = scmp.ne.s32.totalorder %s94, %s97
      %p103 = scmp.eq.s32.totalorder %s16, 0
      %p104 = por %p102, %p103
      %p105 = scmp.ne.s32.totalorder %s94, %s97
      %p106 = scmp.eq.s32.totalorder %s21, 1
      %p107 = por %p105, %p106
      %p108 = scmp.ne.s32.totalorder %s97, %s98
      %p109 = scmp.eq.s32.totalorder %s21, 0
      %p110 = por %p108, %p109
      %p111 = scmp.ne.s32.totalorder %s97, %s98
      %p112 = scmp.eq.s32.totalorder %s22, 1
      %p113 = por %p111, %p112
      %p115 = scmp.ne.s32.totalorder %s98, %s114
      %p116 = scmp.eq.s32.totalorder %s22, 0
      %p117 = por %p115, %p116
      %p118 = scmp.le.s32.totalorder 1, %s16
      %p119 = scmp.lt.s32.totalorder %s16, 3
      %p120 = pnand %p118, %p119
      %p121 = pneg %p120
      // Predicated region
      $region9: #{tpu_custom_call.1} parent=5 // pred_check
        _
      $region10: #{tpu_custom_call.1} parent=5 // pred_check_branch
        %123 = sbr.rel (%p120) target = $region12
      $region11: #{tpu_custom_call.1} parent=5 // pred_region
        %s124 = ssub.s32 %s16, 1
        // Predicated region
        $region13: #{tpu_custom_call.1} parent=11 // pred_check
          %p125 = pneg %p63
        $region14: #{tpu_custom_call.1} parent=11 // pred_check_branch
          %127 = sbr.rel (%p125) target = $region16
        $region15: #{tpu_custom_call.1} parent=11 // pred_region
          %s129 = ssub.s32 256, 256
          %130 = vsyncadd [#allocation6], %s129
          %s131 = sshll.u32 [#allocation5], 4
          %s132 = int_to_ptr.vmem [resolvable:$true] %s131
          %137 = dma.hbm_to_vmem [thread:$0]  %s1, 256, %s132, [#allocation6], 64, 64, 4
        $region16: #{tpu_custom_call.1} parent=11 // pred_fallthru
          _
        // Predicated region
        $region17: #{tpu_custom_call.1} parent=11 // pred_check
          %p138 = pneg %p84
        $region18: #{tpu_custom_call.1} parent=11 // pred_check_branch
          %140 = sbr.rel (%p138) target = $region20
        $region19: #{tpu_custom_call.1} parent=11 // pred_region
          %s142 = ssub.s32 128, 128
          %143 = vsyncadd [#allocation6], %s142
          %s145 = sshll.u32 [#allocation7], 4
          %s146 = int_to_ptr.vmem [resolvable:$true] %s145
          %148 = dma.hbm_to_vmem [thread:$0]  %s2, 128, %s146, [#allocation6]
        $region20: #{tpu_custom_call.1} parent=11 // pred_fallthru
          _
      $region12: #{tpu_custom_call.1} parent=5 // pred_fallthru
        _
      %p149 = scmp.lt.s32.totalorder %s16, 2
      // Predicated region
      $region21: #{tpu_custom_call.1} parent=5 // pred_check
        %p150 = pneg %p149
      $region22: #{tpu_custom_call.1} parent=5 // pred_check_branch
        %152 = sbr.rel (%p150) target = $region24
      $region23: #{tpu_custom_call.1} parent=5 // pred_region
        // Predicated region
        $region25: #{tpu_custom_call.1} parent=23 // pred_check
          %p153 = pneg %p36
        $region26: #{tpu_custom_call.1} parent=23 // pred_check_branch
          %155 = sbr.rel (%p153) target = $region28
        $region27: #{tpu_custom_call.1} parent=23 // pred_region
          %s156 = sand.u32 %s26, 1
          %s157 = scalar_lea.sflag [#allocation3], %s156
          %s158 = sand.u32 %s26, 1
          %s159 = smul.addr %s158, 4
          %s160 = scalar_lea.vmem [#allocation2], %s159
          %s162 = ssub.s32 64, 64
          %163 = vsyncadd %s157, %s162
          %s164 = smul.addr %s16, 64
          %s165 = scalar_lea.hbm %s0, %s164
          %s167 = sshll.u32 %s160, 4
          %s168 = int_to_ptr.vmem [resolvable:$true] %s167
          %170 = dma.hbm_to_vmem [thread:$0]  %s165, 64, %s168, %s157
        $region28: #{tpu_custom_call.1} parent=23 // pred_fallthru
          _
      $region24: #{tpu_custom_call.1} parent=5 // pred_fallthru
        _
      %p171 = scmp.le.s32.totalorder 1, %s16
      %p172 = scmp.lt.s32.totalorder %s16, 3
      %p173 = pnand %p171, %p172
      %p174 = pneg %p173
      // Predicated region
      $region29: #{tpu_custom_call.1} parent=5 // pred_check
        _
      $region30: #{tpu_custom_call.1} parent=5 // pred_check_branch
        %176 = sbr.rel (%p173) target = $region32
      $region31: #{tpu_custom_call.1} parent=5 // pred_region
        %s177 = ssub.s32 %s16, 1
        %s178 = sand.u32 %s29, 1
        %s179 = scalar_lea.sflag [#allocation3], %s178
        %s180 = sand.u32 %s29, 1
        %s181 = smul.addr %s180, 4
        %s182 = scalar_lea.vmem [#allocation2], %s181
        // Predicated region
        $region33: #{tpu_custom_call.1} parent=31 // pred_check
          %p183 = pneg %p42
        $region34: #{tpu_custom_call.1} parent=31 // pred_check_branch
          %185 = sbr.rel (%p183) target = $region36
        $region35: #{tpu_custom_call.1} parent=31 // pred_region
          %186 = dma.done %s179, 64
        $region36: #{tpu_custom_call.1} parent=31 // pred_fallthru
          _
        // Predicated region
        $region37: #{tpu_custom_call.1} parent=31 // pred_check
          %p187 = pneg %p63
        $region38: #{tpu_custom_call.1} parent=31 // pred_check_branch
          %189 = sbr.rel (%p187) target = $region40
        $region39: #{tpu_custom_call.1} parent=31 // pred_region
          %190 = dma.done [#allocation6], 256
        $region40: #{tpu_custom_call.1} parent=31 // pred_fallthru
          _
        // Predicated region
        $region41: #{tpu_custom_call.1} parent=31 // pred_check
          %p191 = pneg %p84
        $region42: #{tpu_custom_call.1} parent=31 // pred_check_branch
          %193 = sbr.rel (%p191) target = $region44
        $region43: #{tpu_custom_call.1} parent=31 // pred_region
          %194 = dma.done [#allocation6], 128
        $region44: #{tpu_custom_call.1} parent=31 // pred_fallthru
          _
        %s195 = sand.u32 %s29, 1
        %s196 = scalar_lea.sflag [#allocation3], %s195
        %s197 = sand.u32 %s29, 1
        %s198 = smul.addr %s197, 4
        %s199 = scalar_lea.vmem [#allocation2], %s198
        %p200 = pneg %p42
        %p201 = pneg %p39
        %p202 = pneg %p63
        %p203 = pneg %p60
        %p204 = pneg %p84
        %p205 = pneg %p81
        %p206 = pneg %p110
        %p207 = pneg %p107
        %s208 = sand.u32 %s97, 1
        %s209 = scalar_lea.sflag [#allocation4], %s208
        %s210 = sand.u32 %s97, 1
        %s211 = smul.addr %s210, 8
        %s212 = scalar_lea.vmem [#allocation8], %s211
        %v214 = vld [vmem:[%s182] sm:$0xf]
        %v215 = vld [vmem:[#allocation5] sm:$0xf]
        %v216 = vld [vmem:[#allocation5 + $0x4] sm:$0xf]
        %v217 = vld [vmem:[#allocation5 + $0x8] sm:$0xf]
        %v218 = vld [vmem:[#allocation5 + $0xc] sm:$0xf]
        %v223 = vunpack.c.l.b16 %v215
        %v224 = vunpack.c.l.b16 %v216
        %v225 = vunpack.c.l.b16 %v217
        %v226 = vunpack.c.l.b16 %v218
        %v227 = vpack.c.b16 %v224, %v223
        %v228 = vpack.c.b16 %v226, %v225
        %vm231 = vcmask 261120
        %v233 = vsel %vm231, %v214, 0
        %235 = vmatprep.subr.bf16.mxu0 0
        %236 = vmatpush1.bf16.msra.mxu0 0
        %237 = vmatprep.subr.bf16.mxu0 0
        %238 = vmatpush1.bf16.msra.mxu0 0
        %239 = vmatprep.subr.bf16.mxu0 0
        %240 = vmatpush1.bf16.msra.mxu0 0
        %241 = vmatprep.subr.bf16.mxu0 0
        %242 = vmatpush1.bf16.msra.mxu0 0
        %243 = vmatprep.subr.bf16.mxu0 0
        %244 = vmatpush1.bf16.msra.mxu0 0
        %245 = vmatprep.subr.bf16.mxu0 0
        %246 = vmatpush1.bf16.msra.mxu0 0
        %247 = vmatprep.subr.bf16.mxu0 0
        %248 = vmatpush1.bf16.msra.mxu0 %v228
        %249 = vmatprep.subr.bf16.mxu0 0
        %250 = vmatpush1.bf16.msra.mxu0 %v227
        %251 = vmatprep.subr.bf16.mxu0 0
        %252 = vmatpush2.bf16.msra.mxu0 0
        %253 = vmatprep.subr.bf16.mxu0 0
        %254 = vmatpush2.bf16.msra.mxu0 0
        %255 = vmatprep.subr.bf16.mxu0 0
        %256 = vmatpush2.bf16.msra.mxu0 0
        %257 = vmatprep.subr.bf16.mxu0 0
        %258 = vmatpush2.bf16.msra.mxu0 0
        %259 = vmatprep.subr.bf16.mxu0 0
        %260 = vmatpush2.bf16.msra.mxu0 0
        %261 = vmatprep.subr.bf16.mxu0 0
        %262 = vmatpush2.bf16.msra.mxu0 0
        %263 = vmatprep.subr.bf16.mxu0 0
        %264 = vmatpush2.bf16.msra.mxu0 0
        %265 = vmatprep.subr.bf16.mxu0 0
        %266 = vmatpush2.bf16.msra.mxu0 0
        %267 = vmatprep.mubr.bf16.mxu0 0
        %268 = vmatmul.mubr.bf16.gmra.mxu0 %v233
        %v269 = vpop.f32.mrf.mxu0
        %v270 = vadd.f32 0.0, %v269
        %v271 = vpop.f32.mrf.mxu0
        %v272 = vpop.f32.mrf.mxu0
        %v273 = vpop.f32.mrf.mxu0
        %274 = vdwg.mxu0
        %v275 = vld [vmem:[#allocation7] sm:$0xff]
        %v276 = vmul.f32 %v270, 0.35355338
        %v277 = vpack.c.bf16 %v276, %v276
        %v278 = vpack.c.bf16 %v270, %v270
        %280 = vrot.lane.b32.xlu0 %v278, 96
        %v281 = vpop.permute.xlu0 %280
        %vm282 = vcmask 64512
        %v284 = vsel %vm282, %v277, 0
        %v287 = vsel %vm282, %v281, 0
        %289 = vmatprep.subr.bf16.mxu0 0
        %290 = vmatpush1.bf16.xpose.msra.mxu0 0
        %291 = vmatprep.subr.bf16.mxu0 0
        %292 = vmatpush1.bf16.xpose.msra.mxu0 0
        %293 = vmatprep.subr.bf16.mxu0 0
        %294 = vmatpush1.bf16.xpose.msra.mxu0 0
        %295 = vmatprep.subr.bf16.mxu0 0
        %296 = vmatpush1.bf16.xpose.msra.mxu0 0
        %297 = vmatprep.subr.bf16.mxu0 0
        %298 = vmatpush1.bf16.xpose.msra.mxu0 0
        %299 = vmatprep.subr.bf16.mxu0 0
        %300 = vmatpush1.bf16.xpose.msra.mxu0 0
        %301 = vmatprep.subr.bf16.mxu0 0
        %302 = vmatpush1.bf16.xpose.msra.mxu0 0
        %303 = vmatprep.subr.bf16.mxu0 0
        %304 = vmatpush1.bf16.xpose.msra.mxu0 %v287
        %305 = vmatprep.subr.bf16.mxu0 0
        %306 = vmatpush2.bf16.xpose.msra.mxu0 0
        %307 = vmatprep.subr.bf16.mxu0 0
        %308 = vmatpush2.bf16.xpose.msra.mxu0 0
        %309 = vmatprep.subr.bf16.mxu0 0
        %310 = vmatpush2.bf16.xpose.msra.mxu0 0
        %311 = vmatprep.subr.bf16.mxu0 0
        %312 = vmatpush2.bf16.xpose.msra.mxu0 0
        %313 = vmatprep.subr.bf16.mxu0 0
        %314 = vmatpush2.bf16.xpose.msra.mxu0 0
        %315 = vmatprep.subr.bf16.mxu0 0
        %316 = vmatpush2.bf16.xpose.msra.mxu0 0
        %317 = vmatprep.subr.bf16.mxu0 0
        %318 = vmatpush2.bf16.xpose.msra.mxu0 0
        %319 = vmatprep.subr.bf16.mxu0 0
        %320 = vmatpush2.bf16.xpose.msra.mxu0 0
        %321 = vmatprep.mubr.bf16.mxu0 0
        %322 = vmatmul.mubr.bf16.gmra.mxu0 %v284
        %v323 = vpop.f32.mrf.mxu0
        %v324 = vadd.f32 %v275, %v323
        %v325 = vpop.f32.mrf.mxu0
        %v326 = vpop.f32.mrf.mxu0
        %v327 = vpop.f32.mrf.mxu0
        %328 = vdwg.mxu0
        %v329 = vsel %vm282, %v324, -inf
        %330 = vmax.xlane.f32.xlu0 %v329
        %v331 = vpop.xlane.xlu0 %330
        %v332 = vsub.f32 %v324, %v331
        %v333 = vmul.f32 %v332, 1.442695
        %v334 = vpow.pop %v333
        %v335 = vsel %vm282, %v334, 0.0
        %336 = vadd.xlane.f32.xlu0 %v335
        %v337 = vpop.xlane.xlu0 %336
        %v338 = vrcp.pop %v337
        %v339 = vmul.f32 %v334, %v338
        %v340 = vpack.c.bf16 %v339, %v339
        %341 = vrot.lane.b32.xlu0 %v278, 64
        %v342 = vpop.permute.xlu0 %341
        %v344 = vsel %vm282, %v340, 0
        %vm346 = vcmask 1043456
        %v348 = vsel %vm346, %v342, 0
        %350 = vmatprep.subr.bf16.mxu0 0
        %351 = vmatpush1.bf16.msra.mxu0 0
        %352 = vmatprep.subr.bf16.mxu0 0
        %353 = vmatpush1.bf16.msra.mxu0 0
        %354 = vmatprep.subr.bf16.mxu0 0
        %355 = vmatpush1.bf16.msra.mxu0 0
        %356 = vmatprep.subr.bf16.mxu0 0
        %357 = vmatpush1.bf16.msra.mxu0 0
        %358 = vmatprep.subr.bf16.mxu0 0
        %359 = vmatpush1.bf16.msra.mxu0 0
        %360 = vmatprep.subr.bf16.mxu0 0
        %361 = vmatpush1.bf16.msra.mxu0 0
        %362 = vmatprep.subr.bf16.mxu0 0
        %363 = vmatpush1.bf16.msra.mxu0 0
        %364 = vmatprep.subr.bf16.mxu0 0
        %365 = vmatpush1.bf16.msra.mxu0 %v348
        %366 = vmatprep.subr.bf16.mxu0 0
        %367 = vmatpush2.bf16.msra.mxu0 0
        %368 = vmatprep.subr.bf16.mxu0 0
        %369 = vmatpush2.bf16.msra.mxu0 0
        %370 = vmatprep.subr.bf16.mxu0 0
        %371 = vmatpush2.bf16.msra.mxu0 0
        %372 = vmatprep.subr.bf16.mxu0 0
        %373 = vmatpush2.bf16.msra.mxu0 0
        %374 = vmatprep.subr.bf16.mxu0 0
        %375 = vmatpush2.bf16.msra.mxu0 0
        %376 = vmatprep.subr.bf16.mxu0 0
        %377 = vmatpush2.bf16.msra.mxu0 0
        %378 = vmatprep.subr.bf16.mxu0 0
        %379 = vmatpush2.bf16.msra.mxu0 0
        %380 = vmatprep.subr.bf16.mxu0 0
        %381 = vmatpush2.bf16.msra.mxu0 0
        %382 = vmatprep.mubr.bf16.mxu0 0
        %383 = vmatmul.mubr.bf16.gmra.mxu0 %v344
        %v384 = vpop.f32.mrf.mxu0
        %v385 = vadd.f32 0.0, %v384
        %v386 = vpop.f32.mrf.mxu0
        %v387 = vpop.f32.mrf.mxu0
        %v388 = vpop.f32.mrf.mxu0
        %389 = vdwg.mxu0
        %391 = vrot.lane.b32.xlu0 %v277, 120
        %v392 = vpop.permute.xlu0 %391
        %393 = vrot.lane.b32.xlu0 %v278, 88
        %v394 = vpop.permute.xlu0 %393
        %v396 = vsel %vm282, %v392, 0
        %v399 = vsel %vm282, %v394, 0
        %401 = vmatprep.subr.bf16.mxu0 0
        %402 = vmatpush1.bf16.xpose.msra.mxu0 0
        %403 = vmatprep.subr.bf16.mxu0 0
        %404 = vmatpush1.bf16.xpose.msra.mxu0 0
        %405 = vmatprep.subr.bf16.mxu0 0
        %406 = vmatpush1.bf16.xpose.msra.mxu0 0
        %407 = vmatprep.subr.bf16.mxu0 0
        %408 = vmatpush1.bf16.xpose.msra.mxu0 0
        %409 = vmatprep.subr.bf16.mxu0 0
        %410 = vmatpush1.bf16.xpose.msra.mxu0 0
        %411 = vmatprep.subr.bf16.mxu0 0
        %412 = vmatpush1.bf16.xpose.msra.mxu0 0
        %413 = vmatprep.subr.bf16.mxu0 0
        %414 = vmatpush1.bf16.xpose.msra.mxu0 0
        %415 = vmatprep.subr.bf16.mxu0 0
        %416 = vmatpush1.bf16.xpose.msra.mxu0 %v399
        %417 = vmatprep.subr.bf16.mxu0 0
        %418 = vmatpush2.bf16.xpose.msra.mxu0 0
        %419 = vmatprep.subr.bf16.mxu0 0
        %420 = vmatpush2.bf16.xpose.msra.mxu0 0
        %421 = vmatprep.subr.bf16.mxu0 0
        %422 = vmatpush2.bf16.xpose.msra.mxu0 0
        %423 = vmatprep.subr.bf16.mxu0 0
        %424 = vmatpush2.bf16.xpose.msra.mxu0 0
        %425 = vmatprep.subr.bf16.mxu0 0
        %426 = vmatpush2.bf16.xpose.msra.mxu0 0
        %427 = vmatprep.subr.bf16.mxu0 0
        %428 = vmatpush2.bf16.xpose.msra.mxu0 0
        %429 = vmatprep.subr.bf16.mxu0 0
        %430 = vmatpush2.bf16.xpose.msra.mxu0 0
        %431 = vmatprep.subr.bf16.mxu0 0
        %432 = vmatpush2.bf16.xpose.msra.mxu0 0
        %433 = vmatprep.mubr.bf16.mxu0 0
        %434 = vmatmul.mubr.bf16.gmra.mxu0 %v396
        %v435 = vpop.f32.mrf.mxu0
        %v436 = vadd.f32 %v275, %v435
        %v437 = vpop.f32.mrf.mxu0
        %v438 = vpop.f32.mrf.mxu0
        %v439 = vpop.f32.mrf.mxu0
        %440 = vdwg.mxu0
        %v441 = vsel %vm282, %v436, -inf
        %442 = vmax.xlane.f32.xlu0 %v441
        %v443 = vpop.xlane.xlu0 %442
        %v444 = vsub.f32 %v436, %v443
        %v445 = vmul.f32 %v444, 1.442695
        %v446 = vpow.pop %v445
        %v447 = vsel %vm282, %v446, 0.0
        %448 = vadd.xlane.f32.xlu0 %v447
        %v449 = vpop.xlane.xlu0 %448
        %v450 = vrcp.pop %v449
        %v451 = vmul.f32 %v446, %v450
        %v452 = vpack.c.bf16 %v451, %v451
        %453 = vrot.lane.b32.xlu0 %v278, 56
        %v454 = vpop.permute.xlu0 %453
        %v456 = vsel %vm282, %v452, 0
        %v459 = vsel %vm346, %v454, 0
        %461 = vmatprep.subr.bf16.mxu0 0
        %462 = vmatpush1.bf16.msra.mxu0 0
        %463 = vmatprep.subr.bf16.mxu0 0
        %464 = vmatpush1.bf16.msra.mxu0 0
        %465 = vmatprep.subr.bf16.mxu0 0
        %466 = vmatpush1.bf16.msra.mxu0 0
        %467 = vmatprep.subr.bf16.mxu0 0
        %468 = vmatpush1.bf16.msra.mxu0 0
        %469 = vmatprep.subr.bf16.mxu0 0
        %470 = vmatpush1.bf16.msra.mxu0 0
        %471 = vmatprep.subr.bf16.mxu0 0
        %472 = vmatpush1.bf16.msra.mxu0 0
        %473 = vmatprep.subr.bf16.mxu0 0
        %474 = vmatpush1.bf16.msra.mxu0 0
        %475 = vmatprep.subr.bf16.mxu0 0
        %476 = vmatpush1.bf16.msra.mxu0 %v459
        %477 = vmatprep.subr.bf16.mxu0 0
        %478 = vmatpush2.bf16.msra.mxu0 0
        %479 = vmatprep.subr.bf16.mxu0 0
        %480 = vmatpush2.bf16.msra.mxu0 0
        %481 = vmatprep.subr.bf16.mxu0 0
        %482 = vmatpush2.bf16.msra.mxu0 0
        %483 = vmatprep.subr.bf16.mxu0 0
        %484 = vmatpush2.bf16.msra.mxu0 0
        %485 = vmatprep.subr.bf16.mxu0 0
        %486 = vmatpush2.bf16.msra.mxu0 0
        %487 = vmatprep.subr.bf16.mxu0 0
        %488 = vmatpush2.bf16.msra.mxu0 0
        %489 = vmatprep.subr.bf16.mxu0 0
        %490 = vmatpush2.bf16.msra.mxu0 0
        %491 = vmatprep.subr.bf16.mxu0 0
        %492 = vmatpush2.bf16.msra.mxu0 0
        %493 = vmatprep.mubr.bf16.mxu0 0
        %494 = vmatmul.mubr.bf16.gmra.mxu0 %v456
        %v495 = vpop.f32.mrf.mxu0
        %v496 = vadd.f32 0.0, %v495
        %v497 = vpop.f32.mrf.mxu0
        %v498 = vpop.f32.mrf.mxu0
        %v499 = vpop.f32.mrf.mxu0
        %500 = vdwg.mxu0
        %501 = vrot.lane.b32.xlu0 %v277, 112
        %v502 = vpop.permute.xlu0 %501
        %503 = vrot.lane.b32.xlu0 %v278, 80
        %v504 = vpop.permute.xlu0 %503
        %v506 = vsel %vm282, %v502, 0
        %v509 = vsel %vm282, %v504, 0
        %511 = vmatprep.subr.bf16.mxu0 0
        %512 = vmatpush1.bf16.xpose.msra.mxu0 0
        %513 = vmatprep.subr.bf16.mxu0 0
        %514 = vmatpush1.bf16.xpose.msra.mxu0 0
        %515 = vmatprep.subr.bf16.mxu0 0
        %516 = vmatpush1.bf16.xpose.msra.mxu0 0
        %517 = vmatprep.subr.bf16.mxu0 0
        %518 = vmatpush1.bf16.xpose.msra.mxu0 0
        %519 = vmatprep.subr.bf16.mxu0 0
        %520 = vmatpush1.bf16.xpose.msra.mxu0 0
        %521 = vmatprep.subr.bf16.mxu0 0
        %522 = vmatpush1.bf16.xpose.msra.mxu0 0
        %523 = vmatprep.subr.bf16.mxu0 0
        %524 = vmatpush1.bf16.xpose.msra.mxu0 0
        %525 = vmatprep.subr.bf16.mxu0 0
        %526 = vmatpush1.bf16.xpose.msra.mxu0 %v509
        %527 = vmatprep.subr.bf16.mxu0 0
        %528 = vmatpush2.bf16.xpose.msra.mxu0 0
        %529 = vmatprep.subr.bf16.mxu0 0
        %530 = vmatpush2.bf16.xpose.msra.mxu0 0
        %531 = vmatprep.subr.bf16.mxu0 0
        %532 = vmatpush2.bf16.xpose.msra.mxu0 0
        %533 = vmatprep.subr.bf16.mxu0 0
        %534 = vmatpush2.bf16.xpose.msra.mxu0 0
        %535 = vmatprep.subr.bf16.mxu0 0
        %536 = vmatpush2.bf16.xpose.msra.mxu0 0
        %537 = vmatprep.subr.bf16.mxu0 0
        %538 = vmatpush2.bf16.xpose.msra.mxu0 0
        %539 = vmatprep.subr.bf16.mxu0 0
        %540 = vmatpush2.bf16.xpose.msra.mxu0 0
        %541 = vmatprep.subr.bf16.mxu0 0
        %542 = vmatpush2.bf16.xpose.msra.mxu0 0
        %543 = vmatprep.mubr.bf16.mxu0 0
        %544 = vmatmul.mubr.bf16.gmra.mxu0 %v506
        %v545 = vpop.f32.mrf.mxu0
        %v546 = vadd.f32 %v275, %v545
        %v547 = vpop.f32.mrf.mxu0
        %v548 = vpop.f32.mrf.mxu0
        %v549 = vpop.f32.mrf.mxu0
        %550 = vdwg.mxu0
        %v551 = vsel %vm282, %v546, -inf
        %552 = vmax.xlane.f32.xlu0 %v551
        %v553 = vpop.xlane.xlu0 %552
        %v554 = vsub.f32 %v546, %v553
        %v555 = vmul.f32 %v554, 1.442695
        %v556 = vpow.pop %v555
        %v557 = vsel %vm282, %v556, 0.0
        %558 = vadd.xlane.f32.xlu0 %v557
        %v559 = vpop.xlane.xlu0 %558
        %v560 = vrcp.pop %v559
        %v561 = vmul.f32 %v556, %v560
        %v562 = vpack.c.bf16 %v561, %v561
        %563 = vrot.lane.b32.xlu0 %v278, 48
        %v564 = vpop.permute.xlu0 %563
        %v566 = vsel %vm282, %v562, 0
        %v569 = vsel %vm346, %v564, 0
        %571 = vmatprep.subr.bf16.mxu0 0
        %572 = vmatpush1.bf16.msra.mxu0 0
        %573 = vmatprep.subr.bf16.mxu0 0
        %574 = vmatpush1.bf16.msra.mxu0 0
        %575 = vmatprep.subr.bf16.mxu0 0
        %576 = vmatpush1.bf16.msra.mxu0 0
        %577 = vmatprep.subr.bf16.mxu0 0
        %578 = vmatpush1.bf16.msra.mxu0 0
        %579 = vmatprep.subr.bf16.mxu0 0
        %580 = vmatpush1.bf16.msra.mxu0 0
        %581 = vmatprep.subr.bf16.mxu0 0
        %582 = vmatpush1.bf16.msra.mxu0 0
        %583 = vmatprep.subr.bf16.mxu0 0
        %584 = vmatpush1.bf16.msra.mxu0 0
        %585 = vmatprep.subr.bf16.mxu0 0
        %586 = vmatpush1.bf16.msra.mxu0 %v569
        %587 = vmatprep.subr.bf16.mxu0 0
        %588 = vmatpush2.bf16.msra.mxu0 0
        %589 = vmatprep.subr.bf16.mxu0 0
        %590 = vmatpush2.bf16.msra.mxu0 0
        %591 = vmatprep.subr.bf16.mxu0 0
        %592 = vmatpush2.bf16.msra.mxu0 0
        %593 = vmatprep.subr.bf16.mxu0 0
        %594 = vmatpush2.bf16.msra.mxu0 0
        %595 = vmatprep.subr.bf16.mxu0 0
        %596 = vmatpush2.bf16.msra.mxu0 0
        %597 = vmatprep.subr.bf16.mxu0 0
        %598 = vmatpush2.bf16.msra.mxu0 0
        %599 = vmatprep.subr.bf16.mxu0 0
        %600 = vmatpush2.bf16.msra.mxu0 0
        %601 = vmatprep.subr.bf16.mxu0 0
        %602 = vmatpush2.bf16.msra.mxu0 0
        %603 = vmatprep.mubr.bf16.mxu0 0
        %604 = vmatmul.mubr.bf16.gmra.mxu0 %v566
        %v605 = vpop.f32.mrf.mxu0
        %v606 = vadd.f32 0.0, %v605
        %v607 = vpop.f32.mrf.mxu0
        %v608 = vpop.f32.mrf.mxu0
        %v609 = vpop.f32.mrf.mxu0
        %610 = vdwg.mxu0
        %611 = vrot.lane.b32.xlu0 %v277, 104
        %v612 = vpop.permute.xlu0 %611
        %613 = vrot.lane.b32.xlu0 %v278, 72
        %v614 = vpop.permute.xlu0 %613
        %v616 = vsel %vm282, %v612, 0
        %v619 = vsel %vm282, %v614, 0
        %621 = vmatprep.subr.bf16.mxu0 0
        %622 = vmatpush1.bf16.xpose.msra.mxu0 0
        %623 = vmatprep.subr.bf16.mxu0 0
        %624 = vmatpush1.bf16.xpose.msra.mxu0 0
        %625 = vmatprep.subr.bf16.mxu0 0
        %626 = vmatpush1.bf16.xpose.msra.mxu0 0
        %627 = vmatprep.subr.bf16.mxu0 0
        %628 = vmatpush1.bf16.xpose.msra.mxu0 0
        %629 = vmatprep.subr.bf16.mxu0 0
        %630 = vmatpush1.bf16.xpose.msra.mxu0 0
        %631 = vmatprep.subr.bf16.mxu0 0
        %632 = vmatpush1.bf16.xpose.msra.mxu0 0
        %633 = vmatprep.subr.bf16.mxu0 0
        %634 = vmatpush1.bf16.xpose.msra.mxu0 0
        %635 = vmatprep.subr.bf16.mxu0 0
        %636 = vmatpush1.bf16.xpose.msra.mxu0 %v619
        %637 = vmatprep.subr.bf16.mxu0 0
        %638 = vmatpush2.bf16.xpose.msra.mxu0 0
        %639 = vmatprep.subr.bf16.mxu0 0
        %640 = vmatpush2.bf16.xpose.msra.mxu0 0
        %641 = vmatprep.subr.bf16.mxu0 0
        %642 = vmatpush2.bf16.xpose.msra.mxu0 0
        %643 = vmatprep.subr.bf16.mxu0 0
        %644 = vmatpush2.bf16.xpose.msra.mxu0 0
        %645 = vmatprep.subr.bf16.mxu0 0
        %646 = vmatpush2.bf16.xpose.msra.mxu0 0
        %647 = vmatprep.subr.bf16.mxu0 0
        %648 = vmatpush2.bf16.xpose.msra.mxu0 0
        %649 = vmatprep.subr.bf16.mxu0 0
        %650 = vmatpush2.bf16.xpose.msra.mxu0 0
        %651 = vmatprep.subr.bf16.mxu0 0
        %652 = vmatpush2.bf16.xpose.msra.mxu0 0
        %653 = vmatprep.mubr.bf16.mxu0 0
        %654 = vmatmul.mubr.bf16.gmra.mxu0 %v616
        %v655 = vpop.f32.mrf.mxu0
        %v656 = vadd.f32 %v275, %v655
        %v657 = vpop.f32.mrf.mxu0
        %v658 = vpop.f32.mrf.mxu0
        %v659 = vpop.f32.mrf.mxu0
        %660 = vdwg.mxu0
        %v661 = vsel %vm282, %v656, -inf
        %662 = vmax.xlane.f32.xlu0 %v661
        %v663 = vpop.xlane.xlu0 %662
        %v664 = vsub.f32 %v656, %v663
        %v665 = vmul.f32 %v664, 1.442695
        %v666 = vpow.pop %v665
        %v667 = vsel %vm282, %v666, 0.0
        %668 = vadd.xlane.f32.xlu0 %v667
        %v669 = vpop.xlane.xlu0 %668
        %v670 = vrcp.pop %v669
        %v671 = vmul.f32 %v666, %v670
        %v672 = vpack.c.bf16 %v671, %v671
        %673 = vrot.lane.b32.xlu0 %v278, 40
        %v674 = vpop.permute.xlu0 %673
        %v676 = vsel %vm282, %v672, 0
        %v679 = vsel %vm346, %v674, 0
        %681 = vmatprep.subr.bf16.mxu0 0
        %682 = vmatpush1.bf16.msra.mxu0 0
        %683 = vmatprep.subr.bf16.mxu0 0
        %684 = vmatpush1.bf16.msra.mxu0 0
        %685 = vmatprep.subr.bf16.mxu0 0
        %686 = vmatpush1.bf16.msra.mxu0 0
        %687 = vmatprep.subr.bf16.mxu0 0
        %688 = vmatpush1.bf16.msra.mxu0 0
        %689 = vmatprep.subr.bf16.mxu0 0
        %690 = vmatpush1.bf16.msra.mxu0 0
        %691 = vmatprep.subr.bf16.mxu0 0
        %692 = vmatpush1.bf16.msra.mxu0 0
        %693 = vmatprep.subr.bf16.mxu0 0
        %694 = vmatpush1.bf16.msra.mxu0 0
        %695 = vmatprep.subr.bf16.mxu0 0
        %696 = vmatpush1.bf16.msra.mxu0 %v679
        %697 = vmatprep.subr.bf16.mxu0 0
        %698 = vmatpush2.bf16.msra.mxu0 0
        %699 = vmatprep.subr.bf16.mxu0 0
        %700 = vmatpush2.bf16.msra.mxu0 0
        %701 = vmatprep.subr.bf16.mxu0 0
        %702 = vmatpush2.bf16.msra.mxu0 0
        %703 = vmatprep.subr.bf16.mxu0 0
        %704 = vmatpush2.bf16.msra.mxu0 0
        %705 = vmatprep.subr.bf16.mxu0 0
        %706 = vmatpush2.bf16.msra.mxu0 0
        %707 = vmatprep.subr.bf16.mxu0 0
        %708 = vmatpush2.bf16.msra.mxu0 0
        %709 = vmatprep.subr.bf16.mxu0 0
        %710 = vmatpush2.bf16.msra.mxu0 0
        %711 = vmatprep.subr.bf16.mxu0 0
        %712 = vmatpush2.bf16.msra.mxu0 0
        %713 = vmatprep.mubr.bf16.mxu0 0
        %714 = vmatmul.mubr.bf16.gmra.mxu0 %v676
        %v715 = vpop.f32.mrf.mxu0
        %v716 = vadd.f32 0.0, %v715
        %v717 = vpop.f32.mrf.mxu0
        %v718 = vpop.f32.mrf.mxu0
        %v719 = vpop.f32.mrf.mxu0
        %720 = vdwg.mxu0
        %722 = vrot.lane.b32.xlu0 %v496, 8
        %v723 = vpop.permute.xlu0 %722
        %726 = vrot.lane.b32.xlu0 %v606, 16
        %v727 = vpop.permute.xlu0 %726
        %730 = vrot.lane.b32.xlu0 %v716, 24
        %v731 = vpop.permute.xlu0 %730
        %v733 = vsel %vm282, %v385, %v723
        %vm734 = vcmask 130048
        %v735 = vsel %vm734, %v733, %v727
        %vm736 = vcmask 195584
        %v737 = vsel %vm736, %v735, %v731
        %738 = vst.msk [vmem:[%s212] sm:$0xff] %vm231, %v737
        %s739 = sand.u32 %s97, 1
        %s740 = scalar_lea.sflag [#allocation4], %s739
        %s741 = sand.u32 %s97, 1
        %s742 = smul.addr %s741, 8
        %s743 = scalar_lea.vmem [#allocation8], %s742
        // Predicated region
        $region45: #{tpu_custom_call.1} parent=31 // pred_check
          %p744 = pneg %p107
        $region46: #{tpu_custom_call.1} parent=31 // pred_check_branch
          %746 = sbr.rel (%p744) target = $region48
        $region47: #{tpu_custom_call.1} parent=31 // pred_region
          %s748 = ssub.s32 128, 128
          %749 = vsyncadd %s740, %s748
          %s750 = smul.addr %s21, 128
          %s751 = scalar_lea.hbm %s3, %s750
          %s753 = sshll.u32 %s743, 4
          %s754 = int_to_ptr.vmem [resolvable:$true] %s753
          %756 = dma.vmem_to_hbm [thread:$0]  %s754, 128, %s751, %s740
        $region48: #{tpu_custom_call.1} parent=31 // pred_fallthru
          _
      $region32: #{tpu_custom_call.1} parent=5 // pred_fallthru
        _
      %p757 = scmp.le.s32.totalorder 2, %s16
      // Predicated region
      $region49: #{tpu_custom_call.1} parent=5 // pred_check
        %p758 = pneg %p757
      $region50: #{tpu_custom_call.1} parent=5 // pred_check_branch
        %760 = sbr.rel (%p758) target = $region52
      $region51: #{tpu_custom_call.1} parent=5 // pred_region
        %s761 = ssub.s32 %s16, 2
        // Predicated region
        $region53: #{tpu_custom_call.1} parent=51 // pred_check
          %p762 = pneg %p113
        $region54: #{tpu_custom_call.1} parent=51 // pred_check_branch
          %764 = sbr.rel (%p762) target = $region56
        $region55: #{tpu_custom_call.1} parent=51 // pred_region
          %s765 = sand.u32 %s98, 1
          %s766 = scalar_lea.sflag [#allocation4], %s765
          %s767 = sand.u32 %s98, 1
          %s768 = smul.addr %s767, 8
          %s769 = scalar_lea.vmem [#allocation8], %s768
          %770 = dma.done %s766, 128
        $region56: #{tpu_custom_call.1} parent=51 // pred_fallthru
          _
      $region52: #{tpu_custom_call.1} parent=5 // pred_fallthru
        _
    $region6: #{tpu_custom_call.1} parent=1 // loop_footer
      %s20 = sadd.s32 1, %s16
    $region7: #{tpu_custom_call.1} parent=1 // loop_footer_branch
      %15 = sbr.rel target = $region3
    $region8: #{tpu_custom_call.1} parent=1 // loop_exit
      _
    %771 = vsyncpa [#allocation3], 1
    %s772 = scalar_lea.sflag [#allocation3], 1
    %773 = vsyncpa %s772, 1
    %774 = vsyncpa [#allocation6], 1
    %775 = vsyncpa [#allocation4], 1
    %s776 = scalar_lea.sflag [#allocation4], 1
    %777 = vsyncpa %s776, 1

</llo_original>
